<compile_context>
chip_gen: v7x
topology: tpu7x:2x2x1
jax: 0.10.0
libtpu: 0.0.40
codegen_flags: <defaults>
</compile_context>

<pallas_src>
import functools

import jax
import jax.numpy as jnp
from jax.experimental import pallas as pl
from jax.experimental.pallas import tpu as pltpu


# --------------------------- fused forward kernel ---------------------------
def _fused_autoencoder_kernel(
    x_ref, ewt_ref, eb_ref, dwt_ref, db_ref,        # inputs
    out_ref, loss_ref, fl_ref, ppl_ref,             # outputs
    acc_feat, acc_pix, acc_dc, acc_dh,              # VMEM scratch accumulators
    *, W, lambda_1, lambda_2, lambda_tv, inv_n_feat, inv_n_pix):
    n = pl.program_id(0)

    @pl.when(n == 0)
    def _init():
        acc_feat[...] = jnp.zeros_like(acc_feat)
        acc_pix[...] = jnp.zeros_like(acc_pix)
        acc_dc[...] = jnp.zeros_like(acc_dc)
        acc_dh[...] = jnp.zeros_like(acc_dh)

    x = x_ref[0]                      # (C, H*W)      image slab, lanes = H*W
    ewt = ewt_ref[...]                # (C_feat, C)   encoder 1x1-conv weight^T
    dwt = dwt_ref[...]                # (C, C_feat)   decoder 1x1-conv weight^T
    eb = eb_ref[...]                  # (C_feat, 1)
    db = db_ref[...]                  # (C, 1)

    # encoder -> decoder -> re-encoder (1x1 convs == channel-mixing matmuls).
    f_in = jnp.maximum(
        jnp.dot(ewt, x, preferred_element_type=jnp.float32) + eb, 0.0)
    out = jnp.dot(dwt, f_in, preferred_element_type=jnp.float32) + db
    f_out = jnp.maximum(
        jnp.dot(ewt, out, preferred_element_type=jnp.float32) + eb, 0.0)

    out_ref[0] = out.astype(out_ref.dtype)

    # -------- loss partial sums (finalized on the last grid step) --------
    df = f_out - f_in                 # feature-space residual
    di = out - x                      # per-pixel residual

    # TV regularizer (beta=2.0): the reference diffs run along NCHW dims 1
    # and 2, i.e. channels and height. Channel diff = sublane-axis diff of the
    # (C, H*W) slab; height diff = lane roll by W with the h==0 rows masked
    # (they contribute 0 in the zero-padded reference).
    dc = out[1:, :] - out[:-1, :]
    lane = jax.lax.broadcasted_iota(jnp.int32, out.shape, 1)
    dh = jnp.where(lane >= W, out - pltpu.roll(out, shift=W, axis=1), 0.0)

    acc_feat[...] += jnp.sum(df * df, keepdims=True)
    acc_pix[...] += jnp.sum(di * di, keepdims=True)
    acc_dc[...] += jnp.sum(dc * dc, keepdims=True)
    acc_dh[...] += jnp.sum(dh * dh, keepdims=True)

    @pl.when(n == pl.num_programs(0) - 1)
    def _finalize():
        feat_l = jnp.sqrt(acc_feat[...] * inv_n_feat)   # sqrt(mean(|.|^2))
        pix_l = jnp.sqrt(acc_pix[...] * inv_n_pix)
        tv = acc_dc[...] + acc_dh[...]
        fl_ref[...] = feat_l
        ppl_ref[...] = pix_l
        loss_ref[...] = lambda_tv * tv + lambda_1 * feat_l + lambda_2 * pix_l


def _autoencoder_forward(x, enc_w, enc_b, dec_w, dec_b,
                         lambda_1, lambda_2, lambda_tv):
    N, C, H, W = x.shape
    C_feat = enc_w.shape[1]
    HW = H * W

    x3 = x.reshape(N, C, HW)            # free: contiguous NCHW reshape
    ewt = enc_w.T                       # (C_feat, C)
    dwt = dec_w.T                       # (C, C_feat)
    eb = enc_b.reshape(C_feat, 1)
    db = dec_b.reshape(C, 1)

    kernel = functools.partial(
        _fused_autoencoder_kernel,
        W=W,
        lambda_1=float(lambda_1),
        lambda_2=float(lambda_2),
        lambda_tv=float(lambda_tv),
        inv_n_feat=1.0 / float(N * C_feat * HW),
        inv_n_pix=1.0 / float(N * C * HW))

    flops = N * (6 * C * C_feat * HW + 8 * (C_feat + C) * HW)
    bytes_accessed = 4 * (2 * N * C * HW + 2 * C * C_feat + C_feat + C + 3)

    out3, loss, fl, ppl = pl.pallas_call(
        kernel,
        out_shape=(
            jax.ShapeDtypeStruct((N, C, HW), jnp.float32),
            jax.ShapeDtypeStruct((1, 1), jnp.float32),
            jax.ShapeDtypeStruct((1, 1), jnp.float32),
            jax.ShapeDtypeStruct((1, 1), jnp.float32),
        ),
        grid_spec=pltpu.PrefetchScalarGridSpec(
            num_scalar_prefetch=0,
            grid=(N,),
            in_specs=[
                pl.BlockSpec((1, C, HW), lambda n: (n, 0, 0)),
                pl.BlockSpec((C_feat, C), lambda n: (0, 0)),   # resident
                pl.BlockSpec((C_feat, 1), lambda n: (0, 0)),   # resident
                pl.BlockSpec((C, C_feat), lambda n: (0, 0)),   # resident
                pl.BlockSpec((C, 1), lambda n: (0, 0)),        # resident
            ],
            out_specs=(
                pl.BlockSpec((1, C, HW), lambda n: (n, 0, 0)),
                pl.BlockSpec((1, 1), lambda n: (0, 0)),
                pl.BlockSpec((1, 1), lambda n: (0, 0)),
                pl.BlockSpec((1, 1), lambda n: (0, 0)),
            ),
            scratch_shapes=[pltpu.VMEM((1, 1), jnp.float32)] * 4,
        ),
        compiler_params=pltpu.CompilerParams(
            dimension_semantics=("arbitrary",)),   # grid carries the reduction
        cost_estimate=pl.CostEstimate(
            flops=flops, transcendentals=2, bytes_accessed=bytes_accessed),
    )(x3, ewt, eb, dwt, db)

    output = out3.reshape(N, C, H, W)
    return output, loss[0, 0], fl[0, 0], ppl[0, 0]


# ------------------------------- autoencoder --------------------------------
class AutoencoderPallas:
    def __init__(self, enc_w, enc_b, dec_w, dec_b,
                 lambda_1, lambda_2, lambda_tv):
        self.enc_w, self.enc_b = enc_w, enc_b
        self.dec_w, self.dec_b = dec_w, dec_b
        self.lambda_1 = lambda_1
        self.lambda_2 = lambda_2
        self.lambda_tv = lambda_tv

    def __call__(self, x):
        return _autoencoder_forward(
            x, self.enc_w, self.enc_b, self.dec_w, self.dec_b,
            self.lambda_1, self.lambda_2, self.lambda_tv)


# ------------------------------ pure-JAX ref --------------------------------
def _reference(x, enc_w, enc_b, dec_w, dec_b, l1, l2, ltv):
    def enc(t):
        y = jnp.einsum("nchw,cf->nfhw", t, enc_w) + enc_b[None, :, None, None]
        return jnp.maximum(y, 0.0)

    def dec(f):
        return jnp.einsum("nfhw,fc->nchw", f, dec_w) + dec_b[None, :, None, None]

    f_in = enc(x)
    out = dec(f_in)
    f_out = enc(out)
    fl = jnp.sqrt(jnp.mean((f_out - f_in) ** 2))
    ppl = jnp.sqrt(jnp.mean((out - x) ** 2))
    dy = out[:, 1:, :, :] - out[:, :-1, :, :]   # NCHW dim 1 (channels)
    dx = out[:, :, 1:, :] - out[:, :, :-1, :]   # NCHW dim 2 (height)
    tv = jnp.sum(dy * dy) + jnp.sum(dx * dx)
    loss = ltv * tv + l1 * fl + l2 * ppl
    return out, loss, fl, ppl


if __name__ == "__main__":
    N, C, H, W = 2, 4, 16, 16     # small NCHW input
    C_FEAT = 32                   # synthetic 'r41' feature channels

    key = jax.random.PRNGKey(0)
    kx, ke, keb, kd, kdb = jax.random.split(key, 5)

    x = jax.random.normal(kx, (N, C, H, W), dtype=jnp.float32)
    enc_w = jax.random.normal(ke, (C, C_FEAT), dtype=jnp.float32) * 0.1
    enc_b = jax.random.normal(keb, (C_FEAT,), dtype=jnp.float32) * 0.05
    dec_w = jax.random.normal(kd, (C_FEAT, C), dtype=jnp.float32) * 0.1
    dec_b = jax.random.normal(kdb, (C,), dtype=jnp.float32) * 0.05

    model = AutoencoderPallas(enc_w, enc_b, dec_w, dec_b,
                              lambda_1=1.0, lambda_2=1.0, lambda_tv=1e-4)

    output, loss, feature_loss, per_pixel_loss = model(x)
    jax.block_until_ready((output, loss, feature_loss, per_pixel_loss))

    assert output.shape == (N, C, H, W)
    assert loss.shape == () and feature_loss.shape == () and per_pixel_loss.shape == ()

    ref_out, ref_loss, ref_fl, ref_ppl = _reference(
        x, enc_w, enc_b, dec_w, dec_b, 1.0, 1.0, 1e-4)
    assert jnp.allclose(output, ref_out, rtol=1e-2, atol=1e-3)
    assert jnp.allclose(loss, ref_loss, rtol=1e-2, atol=1e-3)
    assert jnp.allclose(feature_loss, ref_fl, rtol=1e-2, atol=1e-3)
    assert jnp.allclose(per_pixel_loss, ref_ppl, rtol=1e-2, atol=1e-3)

    print("KERNEL_OK")
</pallas_src>

<mosaic_0001>
module attributes {stable_mosaic.version = 11 : i64} {
  func.func @_fused_autoencoder_kernel(%arg0: i32, %arg1: memref<1x4x256xf32, #tpu.memory_space<vmem>>, %arg2: memref<32x4xf32, #tpu.memory_space<vmem>>, %arg3: memref<32x1xf32, #tpu.memory_space<vmem>>, %arg4: memref<4x32xf32, #tpu.memory_space<vmem>>, %arg5: memref<4x1xf32, #tpu.memory_space<vmem>>, %arg6: memref<1x4x256xf32, #tpu.memory_space<vmem>>, %arg7: memref<1x1xf32, #tpu.memory_space<vmem>>, %arg8: memref<1x1xf32, #tpu.memory_space<vmem>>, %arg9: memref<1x1xf32, #tpu.memory_space<vmem>>, %arg10: memref<1x1xf32, #tpu.memory_space<vmem>>, %arg11: memref<1x1xf32, #tpu.memory_space<vmem>>, %arg12: memref<1x1xf32, #tpu.memory_space<vmem>>, %arg13: memref<1x1xf32, #tpu.memory_space<vmem>>) attributes {dimension_semantics = [#tpu.dimension_semantics<arbitrary>], iteration_bounds = array<i64: 2>, scalar_prefetch = 0 : i64, scratch_operands = 4 : i64, tpu.core_type = #tpu.core_type<tc>, window_params = [{transform_indices = @transform_0, window_bounds = array<i64: 1, 4, 256>}, {pipeline_mode = #tpu.pipeline_mode<synchronous>, transform_indices = @transform_1, window_bounds = array<i64: 32, 4>}, {pipeline_mode = #tpu.pipeline_mode<synchronous>, transform_indices = @transform_2, window_bounds = array<i64: 32, 1>}, {pipeline_mode = #tpu.pipeline_mode<synchronous>, transform_indices = @transform_3, window_bounds = array<i64: 4, 32>}, {pipeline_mode = #tpu.pipeline_mode<synchronous>, transform_indices = @transform_4, window_bounds = array<i64: 4, 1>}, {transform_indices = @transform_5, window_bounds = array<i64: 1, 4, 256>}, {pipeline_mode = #tpu.pipeline_mode<synchronous>, transform_indices = @transform_6, window_bounds = array<i64: 1, 1>}, {pipeline_mode = #tpu.pipeline_mode<synchronous>, transform_indices = @transform_7, window_bounds = array<i64: 1, 1>}, {pipeline_mode = #tpu.pipeline_mode<synchronous>, transform_indices = @transform_8, window_bounds = array<i64: 1, 1>}]} {
    %c0_i32 = arith.constant 0 : i32
    %0 = arith.cmpi eq, %arg0, %c0_i32 : i32
    %1 = arith.extui %0 : i1 to i32
    %c0_i32_0 = arith.constant 0 : i32
    %2 = arith.cmpi ne, %1, %c0_i32_0 : i32
    scf.if %2 {
      %cst_41 = arith.constant 0.000000e+00 : f32
      %76 = vector.broadcast %cst_41 : f32 to vector<1x1xf32>
      %c0_42 = arith.constant 0 : index
      %c0_43 = arith.constant 0 : index
      %77 = vector.load %arg10[%c0_42, %c0_43] : memref<1x1xf32, #tpu.memory_space<vmem>>, vector<1x1xf32>
      tpu.vector_store %arg10[%c0_42, %c0_43], %76 {strides = array<i32>} : memref<1x1xf32, #tpu.memory_space<vmem>>, vector<1x1xf32>,
      %cst_44 = arith.constant 0.000000e+00 : f32
      %78 = vector.broadcast %cst_44 : f32 to vector<1x1xf32>
      %c0_45 = arith.constant 0 : index
      %c0_46 = arith.constant 0 : index
      %79 = vector.load %arg11[%c0_45, %c0_46] : memref<1x1xf32, #tpu.memory_space<vmem>>, vector<1x1xf32>
      tpu.vector_store %arg11[%c0_45, %c0_46], %78 {strides = array<i32>} : memref<1x1xf32, #tpu.memory_space<vmem>>, vector<1x1xf32>,
      %cst_47 = arith.constant 0.000000e+00 : f32
      %80 = vector.broadcast %cst_47 : f32 to vector<1x1xf32>
      %c0_48 = arith.constant 0 : index
      %c0_49 = arith.constant 0 : index
      %81 = vector.load %arg12[%c0_48, %c0_49] : memref<1x1xf32, #tpu.memory_space<vmem>>, vector<1x1xf32>
      tpu.vector_store %arg12[%c0_48, %c0_49], %80 {strides = array<i32>} : memref<1x1xf32, #tpu.memory_space<vmem>>, vector<1x1xf32>,
      %cst_50 = arith.constant 0.000000e+00 : f32
      %82 = vector.broadcast %cst_50 : f32 to vector<1x1xf32>
      %c0_51 = arith.constant 0 : index
      %c0_52 = arith.constant 0 : index
      %83 = vector.load %arg13[%c0_51, %c0_52] : memref<1x1xf32, #tpu.memory_space<vmem>>, vector<1x1xf32>
      tpu.vector_store %arg13[%c0_51, %c0_52], %82 {strides = array<i32>} : memref<1x1xf32, #tpu.memory_space<vmem>>, vector<1x1xf32>,
    } else {
    }
    %c0 = arith.constant 0 : index
    %c0_1 = arith.constant 0 : index
    %c0_2 = arith.constant 0 : index
    %3 = vector.load %arg1[%c0, %c0_1, %c0_2] : memref<1x4x256xf32, #tpu.memory_space<vmem>>, vector<1x4x256xf32>
    %4 = vector.shape_cast %3 : vector<1x4x256xf32> to vector<4x256xf32>
    %c0_3 = arith.constant 0 : index
    %c0_4 = arith.constant 0 : index
    %5 = vector.load %arg2[%c0_3, %c0_4] : memref<32x4xf32, #tpu.memory_space<vmem>>, vector<32x4xf32>
    %c0_5 = arith.constant 0 : index
    %c0_6 = arith.constant 0 : index
    %6 = vector.load %arg4[%c0_5, %c0_6] : memref<4x32xf32, #tpu.memory_space<vmem>>, vector<4x32xf32>
    %c0_7 = arith.constant 0 : index
    %c0_8 = arith.constant 0 : index
    %7 = vector.load %arg3[%c0_7, %c0_8] : memref<32x1xf32, #tpu.memory_space<vmem>>, vector<32x1xf32>
    %c0_9 = arith.constant 0 : index
    %c0_10 = arith.constant 0 : index
    %8 = vector.load %arg5[%c0_9, %c0_10] : memref<4x1xf32, #tpu.memory_space<vmem>>, vector<4x1xf32>
    %cst = arith.constant dense<0.000000e+00> : vector<32x256xf32>
    %9 = tpu.matmul %5, %4, %cst {dimension_numbers = #tpu.dot_dimension_numbers<[1], [0], [0], [1], [0, 0, 1, 1], [], []>} : vector<32x4xf32>, vector<4x256xf32>, vector<32x256xf32> -> vector<32x256xf32>
    %10 = vector.broadcast %7 : vector<32x1xf32> to vector<32x256xf32>
    %11 = arith.addf %9, %10 : vector<32x256xf32>
    %cst_11 = arith.constant 0.000000e+00 : f32
    %12 = vector.broadcast %cst_11 : f32 to vector<32x256xf32>
    %13 = arith.maximumf %11, %12 : vector<32x256xf32>
    %cst_12 = arith.constant dense<0.000000e+00> : vector<4x256xf32>
    %14 = tpu.matmul %6, %13, %cst_12 {dimension_numbers = #tpu.dot_dimension_numbers<[1], [0], [0], [1], [0, 0, 1, 1], [], []>} : vector<4x32xf32>, vector<32x256xf32>, vector<4x256xf32> -> vector<4x256xf32>
    %15 = vector.broadcast %8 : vector<4x1xf32> to vector<4x256xf32>
    %16 = arith.addf %14, %15 : vector<4x256xf32>
    %cst_13 = arith.constant dense<0.000000e+00> : vector<32x256xf32>
    %17 = tpu.matmul %5, %16, %cst_13 {dimension_numbers = #tpu.dot_dimension_numbers<[1], [0], [0], [1], [0, 0, 1, 1], [], []>} : vector<32x4xf32>, vector<4x256xf32>, vector<32x256xf32> -> vector<32x256xf32>
    %18 = vector.broadcast %7 : vector<32x1xf32> to vector<32x256xf32>
    %19 = arith.addf %17, %18 : vector<32x256xf32>
    %cst_14 = arith.constant 0.000000e+00 : f32
    %20 = vector.broadcast %cst_14 : f32 to vector<32x256xf32>
    %21 = arith.maximumf %19, %20 : vector<32x256xf32>
    %c0_15 = arith.constant 0 : index
    %c0_16 = arith.constant 0 : index
    %c0_17 = arith.constant 0 : index
    %22 = vector.load %arg6[%c0_15, %c0_16, %c0_17] : memref<1x4x256xf32, #tpu.memory_space<vmem>>, vector<1x4x256xf32>
    %23 = vector.shape_cast %22 : vector<1x4x256xf32> to vector<4x256xf32>
    %24 = vector.shape_cast %16 : vector<4x256xf32> to vector<1x4x256xf32>
    tpu.vector_store %arg6[%c0_15, %c0_16, %c0_17], %24 {strides = array<i32>} : memref<1x4x256xf32, #tpu.memory_space<vmem>>, vector<1x4x256xf32>,
    %25 = arith.subf %21, %13 : vector<32x256xf32>
    %26 = arith.subf %16, %4 : vector<4x256xf32>
    %27 = vector.extract_strided_slice %16 {offsets = [1, 0], sizes = [3, 256], strides = [1, 1]} : vector<4x256xf32> to vector<3x256xf32>
    %28 = vector.extract_strided_slice %16 {offsets = [0, 0], sizes = [3, 256], strides = [1, 1]} : vector<4x256xf32> to vector<3x256xf32>
    %29 = arith.subf %27, %28 : vector<3x256xf32>
    %30 = tpu.iota {dimensions = array<i32: 1>} : vector<4x256xi32>
    %c16_i32 = arith.constant 16 : i32
    %31 = vector.broadcast %c16_i32 : i32 to vector<4x256xi32>
    %32 = arith.cmpi sge, %30, %31 : vector<4x256xi32>
    %c16_i32_18 = arith.constant 16 : i32
    %33 = tpu.dynamic_rotate %16 by %c16_i32_18 dim 1 : vector<4x256xf32>, i32 -> vector<4x256xf32>
    %34 = arith.subf %16, %33 : vector<4x256xf32>
    %cst_19 = arith.constant 0.000000e+00 : f32
    %35 = vector.broadcast %cst_19 : f32 to vector<4x256xf32>
    %36 = arith.select %32, %34, %35 : vector<4x256xi1>, vector<4x256xf32>
    %c0_20 = arith.constant 0 : index
    %c0_21 = arith.constant 0 : index
    %37 = vector.load %arg10[%c0_20, %c0_21] : memref<1x1xf32, #tpu.memory_space<vmem>>, vector<1x1xf32>
    %38 = arith.mulf %25, %25 : vector<32x256xf32>
    %39 = vector.shape_cast %38 : vector<32x256xf32> to vector<1x32x256xf32>
    %cst_22 = arith.constant dense<0.000000e+00> : vector<1xf32>
    %40 = vector.multi_reduction <add>, %39, %cst_22 [1, 2] : vector<1x32x256xf32> to vector<1xf32>
    %41 = vector.shape_cast %40 : vector<1xf32> to vector<1x1x1xf32>
    %42 = vector.extract %41[0, 0, 0] : f32 from vector<1x1x1xf32>
    %43 = vector.broadcast %42 : f32 to vector<1x1xf32>
    %44 = arith.addf %37, %43 : vector<1x1xf32>
    %c0_23 = arith.constant 0 : index
    %c0_24 = arith.constant 0 : index
    %45 = vector.load %arg10[%c0_23, %c0_24] : memref<1x1xf32, #tpu.memory_space<vmem>>, vector<1x1xf32>
    tpu.vector_store %arg10[%c0_23, %c0_24], %44 {strides = array<i32>} : memref<1x1xf32, #tpu.memory_space<vmem>>, vector<1x1xf32>,
    %c0_25 = arith.constant 0 : index
    %c0_26 = arith.constant 0 : index
    %46 = vector.load %arg11[%c0_25, %c0_26] : memref<1x1xf32, #tpu.memory_space<vmem>>, vector<1x1xf32>
    %47 = arith.mulf %26, %26 : vector<4x256xf32>
    %48 = vector.shape_cast %47 : vector<4x256xf32> to vector<1x4x256xf32>
    %cst_27 = arith.constant dense<0.000000e+00> : vector<1xf32>
    %49 = vector.multi_reduction <add>, %48, %cst_27 [1, 2] : vector<1x4x256xf32> to vector<1xf32>
    %50 = vector.shape_cast %49 : vector<1xf32> to vector<1x1x1xf32>
    %51 = vector.extract %50[0, 0, 0] : f32 from vector<1x1x1xf32>
    %52 = vector.broadcast %51 : f32 to vector<1x1xf32>
    %53 = arith.addf %46, %52 : vector<1x1xf32>
    %c0_28 = arith.constant 0 : index
    %c0_29 = arith.constant 0 : index
    %54 = vector.load %arg11[%c0_28, %c0_29] : memref<1x1xf32, #tpu.memory_space<vmem>>, vector<1x1xf32>
    tpu.vector_store %arg11[%c0_28, %c0_29], %53 {strides = array<i32>} : memref<1x1xf32, #tpu.memory_space<vmem>>, vector<1x1xf32>,
    %c0_30 = arith.constant 0 : index
    %c0_31 = arith.constant 0 : index
    %55 = vector.load %arg12[%c0_30, %c0_31] : memref<1x1xf32, #tpu.memory_space<vmem>>, vector<1x1xf32>
    %56 = arith.mulf %29, %29 : vector<3x256xf32>
    %57 = vector.shape_cast %56 : vector<3x256xf32> to vector<1x3x256xf32>
    %cst_32 = arith.constant dense<0.000000e+00> : vector<1xf32>
    %58 = vector.multi_reduction <add>, %57, %cst_32 [1, 2] : vector<1x3x256xf32> to vector<1xf32>
    %59 = vector.shape_cast %58 : vector<1xf32> to vector<1x1x1xf32>
    %60 = vector.extract %59[0, 0, 0] : f32 from vector<1x1x1xf32>
    %61 = vector.broadcast %60 : f32 to vector<1x1xf32>
    %62 = arith.addf %55, %61 : vector<1x1xf32>
    %c0_33 = arith.constant 0 : index
    %c0_34 = arith.constant 0 : index
    %63 = vector.load %arg12[%c0_33, %c0_34] : memref<1x1xf32, #tpu.memory_space<vmem>>, vector<1x1xf32>
    tpu.vector_store %arg12[%c0_33, %c0_34], %62 {strides = array<i32>} : memref<1x1xf32, #tpu.memory_space<vmem>>, vector<1x1xf32>,
    %c0_35 = arith.constant 0 : index
    %c0_36 = arith.constant 0 : index
    %64 = vector.load %arg13[%c0_35, %c0_36] : memref<1x1xf32, #tpu.memory_space<vmem>>, vector<1x1xf32>
    %65 = arith.mulf %36, %36 : vector<4x256xf32>
    %66 = vector.shape_cast %65 : vector<4x256xf32> to vector<1x4x256xf32>
    %cst_37 = arith.constant dense<0.000000e+00> : vector<1xf32>
    %67 = vector.multi_reduction <add>, %66, %cst_37 [1, 2] : vector<1x4x256xf32> to vector<1xf32>
    %68 = vector.shape_cast %67 : vector<1xf32> to vector<1x1x1xf32>
    %69 = vector.extract %68[0, 0, 0] : f32 from vector<1x1x1xf32>
    %70 = vector.broadcast %69 : f32 to vector<1x1xf32>
    %71 = arith.addf %64, %70 : vector<1x1xf32>
    %c0_38 = arith.constant 0 : index
    %c0_39 = arith.constant 0 : index
    %72 = vector.load %arg13[%c0_38, %c0_39] : memref<1x1xf32, #tpu.memory_space<vmem>>, vector<1x1xf32>
    tpu.vector_store %arg13[%c0_38, %c0_39], %71 {strides = array<i32>} : memref<1x1xf32, #tpu.memory_space<vmem>>, vector<1x1xf32>,
    %c1_i32 = arith.constant 1 : i32
    %73 = arith.cmpi eq, %arg0, %c1_i32 : i32
    %74 = arith.extui %73 : i1 to i32
    %c0_i32_40 = arith.constant 0 : i32
    %75 = arith.cmpi ne, %74, %c0_i32_40 : i32
    scf.if %75 {
      %c0_41 = arith.constant 0 : index
      %c0_42 = arith.constant 0 : index
      %76 = vector.load %arg10[%c0_41, %c0_42] : memref<1x1xf32, #tpu.memory_space<vmem>>, vector<1x1xf32>
      %cst_43 = arith.constant 6.10351563E-5 : f32
      %77 = vector.broadcast %cst_43 : f32 to vector<1x1xf32>
      %78 = arith.mulf %76, %77 : vector<1x1xf32>
      %79 = math.sqrt %78 : vector<1x1xf32>
      %c0_44 = arith.constant 0 : index
      %c0_45 = arith.constant 0 : index
      %80 = vector.load %arg11[%c0_44, %c0_45] : memref<1x1xf32, #tpu.memory_space<vmem>>, vector<1x1xf32>
      %cst_46 = arith.constant 4.8828125E-4 : f32
      %81 = vector.broadcast %cst_46 : f32 to vector<1x1xf32>
      %82 = arith.mulf %80, %81 : vector<1x1xf32>
      %83 = math.sqrt %82 : vector<1x1xf32>
      %c0_47 = arith.constant 0 : index
      %c0_48 = arith.constant 0 : index
      %84 = vector.load %arg12[%c0_47, %c0_48] : memref<1x1xf32, #tpu.memory_space<vmem>>, vector<1x1xf32>
      %c0_49 = arith.constant 0 : index
      %c0_50 = arith.constant 0 : index
      %85 = vector.load %arg13[%c0_49, %c0_50] : memref<1x1xf32, #tpu.memory_space<vmem>>, vector<1x1xf32>
      %86 = arith.addf %84, %85 : vector<1x1xf32>
      %c0_51 = arith.constant 0 : index
      %c0_52 = arith.constant 0 : index
      %87 = vector.load %arg8[%c0_51, %c0_52] : memref<1x1xf32, #tpu.memory_space<vmem>>, vector<1x1xf32>
      tpu.vector_store %arg8[%c0_51, %c0_52], %79 {strides = array<i32>} : memref<1x1xf32, #tpu.memory_space<vmem>>, vector<1x1xf32>,
      %c0_53 = arith.constant 0 : index
      %c0_54 = arith.constant 0 : index
      %88 = vector.load %arg9[%c0_53, %c0_54] : memref<1x1xf32, #tpu.memory_space<vmem>>, vector<1x1xf32>
      tpu.vector_store %arg9[%c0_53, %c0_54], %83 {strides = array<i32>} : memref<1x1xf32, #tpu.memory_space<vmem>>, vector<1x1xf32>,
      %cst_55 = arith.constant 9.99999974E-5 : f32
      %89 = vector.broadcast %cst_55 : f32 to vector<1x1xf32>
      %90 = arith.mulf %89, %86 : vector<1x1xf32>
      %cst_56 = arith.constant 1.000000e+00 : f32
      %91 = vector.broadcast %cst_56 : f32 to vector<1x1xf32>
      %92 = arith.mulf %91, %79 : vector<1x1xf32>
      %93 = arith.addf %90, %92 : vector<1x1xf32>
      %cst_57 = arith.constant 1.000000e+00 : f32
      %94 = vector.broadcast %cst_57 : f32 to vector<1x1xf32>
      %95 = arith.mulf %94, %83 : vector<1x1xf32>
      %96 = arith.addf %93, %95 : vector<1x1xf32>
      %c0_58 = arith.constant 0 : index
      %c0_59 = arith.constant 0 : index
      %97 = vector.load %arg7[%c0_58, %c0_59] : memref<1x1xf32, #tpu.memory_space<vmem>>, vector<1x1xf32>
      tpu.vector_store %arg7[%c0_58, %c0_59], %96 {strides = array<i32>} : memref<1x1xf32, #tpu.memory_space<vmem>>, vector<1x1xf32>,
    } else {
    }
    return
  }
  func.func @transform_0(%arg0: i32) -> (i32, i32, i32) {
    %c0_i32 = arith.constant 0 : i32
    %c0_i32_0 = arith.constant 0 : i32
    %c0_i32_1 = arith.constant 0 : i32
    return %arg0, %c0_i32, %c0_i32_0 : i32, i32, i32
  }
  func.func @transform_1(%arg0: i32) -> (i32, i32) {
    %c0_i32 = arith.constant 0 : i32
    %c0_i32_0 = arith.constant 0 : i32
    %c0_i32_1 = arith.constant 0 : i32
    return %c0_i32, %c0_i32_0 : i32, i32
  }
  func.func @transform_2(%arg0: i32) -> (i32, i32) {
    %c0_i32 = arith.constant 0 : i32
    %c0_i32_0 = arith.constant 0 : i32
    %c0_i32_1 = arith.constant 0 : i32
    return %c0_i32, %c0_i32_0 : i32, i32
  }
  func.func @transform_3(%arg0: i32) -> (i32, i32) {
    %c0_i32 = arith.constant 0 : i32
    %c0_i32_0 = arith.constant 0 : i32
    %c0_i32_1 = arith.constant 0 : i32
    return %c0_i32, %c0_i32_0 : i32, i32
  }
  func.func @transform_4(%arg0: i32) -> (i32, i32) {
    %c0_i32 = arith.constant 0 : i32
    %c0_i32_0 = arith.constant 0 : i32
    %c0_i32_1 = arith.constant 0 : i32
    return %c0_i32, %c0_i32_0 : i32, i32
  }
  func.func @transform_5(%arg0: i32) -> (i32, i32, i32) {
    %c0_i32 = arith.constant 0 : i32
    %c0_i32_0 = arith.constant 0 : i32
    %c0_i32_1 = arith.constant 0 : i32
    return %arg0, %c0_i32, %c0_i32_0 : i32, i32, i32
  }
  func.func @transform_6(%arg0: i32) -> (i32, i32) {
    %c0_i32 = arith.constant 0 : i32
    %c0_i32_0 = arith.constant 0 : i32
    %c0_i32_1 = arith.constant 0 : i32
    return %c0_i32, %c0_i32_0 : i32, i32
  }
  func.func @transform_7(%arg0: i32) -> (i32, i32) {
    %c0_i32 = arith.constant 0 : i32
    %c0_i32_0 = arith.constant 0 : i32
    %c0_i32_1 = arith.constant 0 : i32
    return %c0_i32, %c0_i32_0 : i32, i32
  }
  func.func @transform_8(%arg0: i32) -> (i32, i32) {
    %c0_i32 = arith.constant 0 : i32
    %c0_i32_0 = arith.constant 0 : i32
    %c0_i32_1 = arith.constant 0 : i32
    return %c0_i32, %c0_i32_0 : i32, i32
  }
}

</mosaic_0001>

<llo_original>
// kernel: tpu_custom_call.1
$region0: #{tpu_custom_call.1}
  #allocation0 [shape = 'u32[]', space=smem, size = 0x4, offset = 0x4, fixed_abs, tag = 'smem constant byte address 0x4 - core index']
  #allocation1 [shape = 'u32[144,128]{1,0:T(1,128)}', space=vmem, size = 0x12000, scoped, tag = 'internal scratch']
  #allocation2 [shape = 'f32[1,1]{1,0:T(1,128)}', space=vmem, size = 0x200, scoped, tag = 'scratch operand']
  #allocation3 [shape = 'f32[1,1]{1,0:T(1,128)}', space=vmem, size = 0x200, scoped, tag = 'scratch operand']
  #allocation4 [shape = 'f32[1,1]{1,0:T(1,128)}', space=vmem, size = 0x200, scoped, tag = 'scratch operand']
  #allocation5 [shape = 'f32[1,1]{1,0:T(1,128)}', space=vmem, size = 0x200, scoped, tag = 'scratch operand']
  %s0 = inlined_call_operand.vmem [shape: f32[2,4,256], index: 0, kind: input, shape index: {}]
  %s1 = inlined_call_operand.vmem [shape: f32[32,4], index: 1, kind: input, shape index: {}]
  %s2 = inlined_call_operand.vmem [shape: f32[32,1], index: 2, kind: input, shape index: {}]
  %s3 = inlined_call_operand.vmem [shape: f32[4,32], index: 3, kind: input, shape index: {}]
  %s4 = inlined_call_operand.vmem [shape: f32[4,1], index: 4, kind: input, shape index: {}]
  %s5 = inlined_call_operand.hbm [shape: f32[2,4,256], index: 5, kind: output, shape index: {0}]
  %s6 = inlined_call_operand.hbm [shape: f32[1,1], index: 6, kind: output, shape index: {1}]
  %s7 = inlined_call_operand.hbm [shape: f32[1,1], index: 7, kind: output, shape index: {2}]
  %s8 = inlined_call_operand.hbm [shape: f32[1,1], index: 8, kind: output, shape index: {3}]
  %9 = xla_tuple %s5, %s6, %s7, %s8
  %s10 = sld [smem:[#allocation0]]
  $region85: #{tpu_custom_call.1} parent=0
    _
  %s12 = ssub.s32 1, %s10
  %s13 = scalar_select 0, %s12, %s10
  $region1: #{tpu_custom_call.1} parent=0
    #allocation6 [shape = 'u8[8192]{0}', space=vmem, size = 0x2000, scoped, tag = 'output window, operand 0']
    #allocation7 [shape = 's32[2]{0}', space=sflag, size = 0x8, scoped, tag = 'scoped memory for tpu_custom_call.1']
    #allocation8 [shape = 'u8[512]{0}', space=vmem, size = 0x400, scoped, tag = 'output window, operand 1, single buffered']
    #allocation9 [shape = 's32[1]{0}', space=sflag, size = 0x4, scoped, tag = 'scoped memory for tpu_custom_call.1']
    #allocation10 [shape = 'u8[512]{0}', space=vmem, size = 0x400, scoped, tag = 'output window, operand 2, single buffered']
    #allocation11 [shape = 'u8[512]{0}', space=vmem, size = 0x400, scoped, tag = 'output window, operand 3, single buffered']
    #allocation12 [shape = 's32[1]{0}', space=sflag, size = 0x4, scoped, tag = 'scoped memory for tpu_custom_call.1']
    %14 = vsyncpa [#allocation7], 0
    %s15 = scalar_lea.sflag [#allocation7], 1
    %16 = vsyncpa %s15, 0
    %17 = vsyncpa [#allocation9], 0
    %18 = vsyncpa [#allocation12], 0
    loop: start=0, step=1, limit=4
    $region2: #{tpu_custom_call.1} parent=1 // loop_pre_header
      _
    $region3: #{tpu_custom_call.1} parent=1 // loop_header
      %s20 = sphi 0, %s24
      %p21 = scmp.ge.s32.totalorder %s20, 4
      %s30 = sphi 0, %s32
      %s33 = sphi 0, %s30
      %s34 = sphi 0, %s33
      %s50 = sphi 0, %s34
      %s54 = sphi 0, %s54
      %s56 = sphi 0, %s54
      %s57 = sphi 0, %s56
      %s71 = sphi 0, %s57
      %s75 = sphi 0, %s75
      %s77 = sphi 0, %s75
      %s78 = sphi 0, %s77
      %s92 = sphi 0, %s78
      %s96 = sphi 0, %s96
      %s98 = sphi 0, %s96
      %s99 = sphi 0, %s98
      %s113 = sphi 0, %s99
      %s117 = sphi 0, %s117
      %s119 = sphi 0, %s117
      %s120 = sphi 0, %s119
      %s134 = sphi 0, %s120
      %s140 = sphi 0, %s142
      %s143 = sphi 0, %s140
      %s144 = sphi 0, %s143
      %s160 = sphi 0, %s144
      %s164 = sphi 0, %s164
      %s166 = sphi 0, %s164
      %s167 = sphi 0, %s166
      %s181 = sphi 0, %s167
      %s185 = sphi 0, %s185
      %s187 = sphi 0, %s185
      %s188 = sphi 0, %s187
      %s202 = sphi 0, %s188
      %s206 = sphi 0, %s206
      %s208 = sphi 0, %s206
      %s209 = sphi 0, %s208
      %s223 = sphi 0, %s209
    $region4: #{tpu_custom_call.1} parent=1 // loop_header_branch
      %23 = sbr.rel (%p21) target = $region8
    $region5: #{tpu_custom_call.1} parent=1 // loop_body
      %s25 = ssub.s32 %s20, 1
      %s26 = ssub.s32 %s20, 2
      %s27 = sadd.s32 %s20, 1
      %s28 = ssub.s32 %s20, %s27
      %p29 = scmp.eq.s32.totalorder %s28, 0
      %s31 = sadd.s32 %s30, 1
      %s32 = scalar_select %p29, %s30, %s31
      %p35 = pneg %p29
      %p36 = scmp.eq.s32.totalorder %s20, 1
      %p37 = por %p35, %p36
      %p38 = scmp.ne.s32.totalorder %s30, %s33
      %p39 = scmp.eq.s32.totalorder %s20, 0
      %p40 = por %p38, %p39
      %p41 = scmp.ne.s32.totalorder %s30, %s33
      %p42 = scmp.eq.s32.totalorder %s25, 1
      %p43 = por %p41, %p42
      %p44 = scmp.ne.s32.totalorder %s33, %s34
      %p45 = scmp.eq.s32.totalorder %s25, 0
      %p46 = por %p44, %p45
      %p47 = scmp.ne.s32.totalorder %s33, %s34
      %p48 = scmp.eq.s32.totalorder %s26, 1
      %p49 = por %p47, %p48
      %p51 = scmp.ne.s32.totalorder %s34, %s50
      %p52 = scmp.eq.s32.totalorder %s26, 0
      %p53 = por %p51, %p52
      %s55 = sadd.s32 %s54, 1
      %p58 = scmp.eq.s32.totalorder %s20, 1
      %p59 = scmp.ne.s32.totalorder %s54, %s56
      %p60 = scmp.eq.s32.totalorder %s20, 0
      %p61 = por %p59, %p60
      %p62 = scmp.ne.s32.totalorder %s54, %s56
      %p63 = scmp.eq.s32.totalorder %s25, 1
      %p64 = por %p62, %p63
      %p65 = scmp.ne.s32.totalorder %s56, %s57
      %p66 = scmp.eq.s32.totalorder %s25, 0
      %p67 = por %p65, %p66
      %p68 = scmp.ne.s32.totalorder %s56, %s57
      %p69 = scmp.eq.s32.totalorder %s26, 1
      %p70 = por %p68, %p69
      %p72 = scmp.ne.s32.totalorder %s57, %s71
      %p73 = scmp.eq.s32.totalorder %s26, 0
      %p74 = por %p72, %p73
      %s76 = sadd.s32 %s75, 1
      %p79 = scmp.eq.s32.totalorder %s20, 1
      %p80 = scmp.ne.s32.totalorder %s75, %s77
      %p81 = scmp.eq.s32.totalorder %s20, 0
      %p82 = por %p80, %p81
      %p83 = scmp.ne.s32.totalorder %s75, %s77
      %p84 = scmp.eq.s32.totalorder %s25, 1
      %p85 = por %p83, %p84
      %p86 = scmp.ne.s32.totalorder %s77, %s78
      %p87 = scmp.eq.s32.totalorder %s25, 0
      %p88 = por %p86, %p87
      %p89 = scmp.ne.s32.totalorder %s77, %s78
      %p90 = scmp.eq.s32.totalorder %s26, 1
      %p91 = por %p89, %p90
      %p93 = scmp.ne.s32.totalorder %s78, %s92
      %p94 = scmp.eq.s32.totalorder %s26, 0
      %p95 = por %p93, %p94
      %s97 = sadd.s32 %s96, 1
      %p100 = scmp.eq.s32.totalorder %s20, 1
      %p101 = scmp.ne.s32.totalorder %s96, %s98
      %p102 = scmp.eq.s32.totalorder %s20, 0
      %p103 = por %p101, %p102
      %p104 = scmp.ne.s32.totalorder %s96, %s98
      %p105 = scmp.eq.s32.totalorder %s25, 1
      %p106 = por %p104, %p105
      %p107 = scmp.ne.s32.totalorder %s98, %s99
      %p108 = scmp.eq.s32.totalorder %s25, 0
      %p109 = por %p107, %p108
      %p110 = scmp.ne.s32.totalorder %s98, %s99
      %p111 = scmp.eq.s32.totalorder %s26, 1
      %p112 = por %p110, %p111
      %p114 = scmp.ne.s32.totalorder %s99, %s113
      %p115 = scmp.eq.s32.totalorder %s26, 0
      %p116 = por %p114, %p115
      %s118 = sadd.s32 %s117, 1
      %p121 = scmp.eq.s32.totalorder %s20, 1
      %p122 = scmp.ne.s32.totalorder %s117, %s119
      %p123 = scmp.eq.s32.totalorder %s20, 0
      %p124 = por %p122, %p123
      %p125 = scmp.ne.s32.totalorder %s117, %s119
      %p126 = scmp.eq.s32.totalorder %s25, 1
      %p127 = por %p125, %p126
      %p128 = scmp.ne.s32.totalorder %s119, %s120
      %p129 = scmp.eq.s32.totalorder %s25, 0
      %p130 = por %p128, %p129
      %p131 = scmp.ne.s32.totalorder %s119, %s120
      %p132 = scmp.eq.s32.totalorder %s26, 1
      %p133 = por %p131, %p132
      %p135 = scmp.ne.s32.totalorder %s120, %s134
      %p136 = scmp.eq.s32.totalorder %s26, 0
      %p137 = por %p135, %p136
      %s138 = ssub.s32 %s20, %s27
      %p139 = scmp.eq.s32.totalorder %s138, 0
      %s141 = sadd.s32 %s140, 1
      %s142 = scalar_select %p139, %s140, %s141
      %p145 = pneg %p139
      %p146 = scmp.eq.s32.totalorder %s20, 1
      %p147 = por %p145, %p146
      %p148 = scmp.ne.s32.totalorder %s140, %s143
      %p149 = scmp.eq.s32.totalorder %s20, 0
      %p150 = por %p148, %p149
      %p151 = scmp.ne.s32.totalorder %s140, %s143
      %p152 = scmp.eq.s32.totalorder %s25, 1
      %p153 = por %p151, %p152
      %p154 = scmp.ne.s32.totalorder %s143, %s144
      %p155 = scmp.eq.s32.totalorder %s25, 0
      %p156 = por %p154, %p155
      %p157 = scmp.ne.s32.totalorder %s143, %s144
      %p158 = scmp.eq.s32.totalorder %s26, 1
      %p159 = por %p157, %p158
      %p161 = scmp.ne.s32.totalorder %s144, %s160
      %p162 = scmp.eq.s32.totalorder %s26, 0
      %p163 = por %p161, %p162
      %s165 = sadd.s32 %s164, 1
      %p168 = scmp.eq.s32.totalorder %s20, 1
      %p169 = scmp.ne.s32.totalorder %s164, %s166
      %p170 = scmp.eq.s32.totalorder %s20, 0
      %p171 = por %p169, %p170
      %p172 = scmp.ne.s32.totalorder %s164, %s166
      %p173 = scmp.eq.s32.totalorder %s25, 1
      %p174 = por %p172, %p173
      %p175 = scmp.ne.s32.totalorder %s166, %s167
      %p176 = scmp.eq.s32.totalorder %s25, 0
      %p177 = por %p175, %p176
      %p178 = scmp.ne.s32.totalorder %s166, %s167
      %p179 = scmp.eq.s32.totalorder %s26, 1
      %p180 = por %p178, %p179
      %p182 = scmp.ne.s32.totalorder %s167, %s181
      %p183 = scmp.eq.s32.totalorder %s26, 0
      %p184 = por %p182, %p183
      %s186 = sadd.s32 %s185, 1
      %p189 = scmp.eq.s32.totalorder %s20, 1
      %p190 = scmp.ne.s32.totalorder %s185, %s187
      %p191 = scmp.eq.s32.totalorder %s20, 0
      %p192 = por %p190, %p191
      %p193 = scmp.ne.s32.totalorder %s185, %s187
      %p194 = scmp.eq.s32.totalorder %s25, 1
      %p195 = por %p193, %p194
      %p196 = scmp.ne.s32.totalorder %s187, %s188
      %p197 = scmp.eq.s32.totalorder %s25, 0
      %p198 = por %p196, %p197
      %p199 = scmp.ne.s32.totalorder %s187, %s188
      %p200 = scmp.eq.s32.totalorder %s26, 1
      %p201 = por %p199, %p200
      %p203 = scmp.ne.s32.totalorder %s188, %s202
      %p204 = scmp.eq.s32.totalorder %s26, 0
      %p205 = por %p203, %p204
      %s207 = sadd.s32 %s206, 1
      %p210 = scmp.eq.s32.totalorder %s20, 1
      %p211 = scmp.ne.s32.totalorder %s206, %s208
      %p212 = scmp.eq.s32.totalorder %s20, 0
      %p213 = por %p211, %p212
      %p214 = scmp.ne.s32.totalorder %s206, %s208
      %p215 = scmp.eq.s32.totalorder %s25, 1
      %p216 = por %p214, %p215
      %p217 = scmp.ne.s32.totalorder %s208, %s209
      %p218 = scmp.eq.s32.totalorder %s25, 0
      %p219 = por %p217, %p218
      %p220 = scmp.ne.s32.totalorder %s208, %s209
      %p221 = scmp.eq.s32.totalorder %s26, 1
      %p222 = por %p220, %p221
      %p224 = scmp.ne.s32.totalorder %s209, %s223
      %p225 = scmp.eq.s32.totalorder %s26, 0
      %p226 = por %p224, %p225
      %p227 = scmp.le.s32.totalorder 1, %s20
      %p228 = scmp.lt.s32.totalorder %s20, 3
      %p229 = pnand %p227, %p228
      %p230 = pneg %p229
      // Predicated region
      $region9: #{tpu_custom_call.1} parent=5 // pred_check
        _
      $region10: #{tpu_custom_call.1} parent=5 // pred_check_branch
        %232 = sbr.rel (%p229) target = $region12
      $region11: #{tpu_custom_call.1} parent=5 // pred_region
        %s233 = ssub.s32 %s20, 1
        // Predicated region
        $region13: #{tpu_custom_call.1} parent=11 // pred_check
          %p234 = pneg %p67
        $region14: #{tpu_custom_call.1} parent=11 // pred_check_branch
          %236 = sbr.rel (%p234) target = $region16
        $region15: #{tpu_custom_call.1} parent=11 // pred_region
          _
        $region16: #{tpu_custom_call.1} parent=11 // pred_fallthru
          _
        // Predicated region
        $region17: #{tpu_custom_call.1} parent=11 // pred_check
          %p237 = pneg %p88
        $region18: #{tpu_custom_call.1} parent=11 // pred_check_branch
          %239 = sbr.rel (%p237) target = $region20
        $region19: #{tpu_custom_call.1} parent=11 // pred_region
          _
        $region20: #{tpu_custom_call.1} parent=11 // pred_fallthru
          _
        // Predicated region
        $region21: #{tpu_custom_call.1} parent=11 // pred_check
          %p240 = pneg %p109
        $region22: #{tpu_custom_call.1} parent=11 // pred_check_branch
          %242 = sbr.rel (%p240) target = $region24
        $region23: #{tpu_custom_call.1} parent=11 // pred_region
          _
        $region24: #{tpu_custom_call.1} parent=11 // pred_fallthru
          _
        // Predicated region
        $region25: #{tpu_custom_call.1} parent=11 // pred_check
          %p243 = pneg %p130
        $region26: #{tpu_custom_call.1} parent=11 // pred_check_branch
          %245 = sbr.rel (%p243) target = $region28
        $region27: #{tpu_custom_call.1} parent=11 // pred_region
          _
        $region28: #{tpu_custom_call.1} parent=11 // pred_fallthru
          _
      $region12: #{tpu_custom_call.1} parent=5 // pred_fallthru
        _
      %p246 = scmp.lt.s32.totalorder %s20, 2
      // Predicated region
      $region29: #{tpu_custom_call.1} parent=5 // pred_check
        %p247 = pneg %p246
      $region30: #{tpu_custom_call.1} parent=5 // pred_check_branch
        %249 = sbr.rel (%p247) target = $region32
      $region31: #{tpu_custom_call.1} parent=5 // pred_region
        // Predicated region
        $region33: #{tpu_custom_call.1} parent=31 // pred_check
          %p250 = pneg %p40
        $region34: #{tpu_custom_call.1} parent=31 // pred_check_branch
          %252 = sbr.rel (%p250) target = $region36
        $region35: #{tpu_custom_call.1} parent=31 // pred_region
          %p253 = scmp.lt.s32.totalorder %s20, 1
          %s254 = scalar_select %p253, %s20, 1
          %s255 = smul.addr %s254, 2
          %s256 = smul.addr %s255, 4
          %s257 = scalar_lea.vmem %s0, %s256
        $region36: #{tpu_custom_call.1} parent=31 // pred_fallthru
          _
      $region32: #{tpu_custom_call.1} parent=5 // pred_fallthru
        _
      %p258 = scmp.le.s32.totalorder 1, %s20
      %p259 = scmp.lt.s32.totalorder %s20, 3
      %p260 = pnand %p258, %p259
      %p261 = pneg %p260
      // Predicated region
      $region37: #{tpu_custom_call.1} parent=5 // pred_check
        _
      $region38: #{tpu_custom_call.1} parent=5 // pred_check_branch
        %263 = sbr.rel (%p260) target = $region40
      $region39: #{tpu_custom_call.1} parent=5 // pred_region
        %s264 = ssub.s32 %s20, 1
        %p265 = scmp.lt.s32.totalorder %s25, 1
        %s266 = scalar_select %p265, %s25, 1
        %s267 = smul.addr %s266, 2
        %s268 = smul.addr %s267, 4
        %s269 = scalar_lea.vmem %s0, %s268
        %p270 = pneg %p46
        %p271 = pneg %p43
        %p272 = pneg %p67
        %p273 = pneg %p64
        %p274 = pneg %p88
        %p275 = pneg %p85
        %p276 = pneg %p109
        %p277 = pneg %p106
        %p278 = pneg %p130
        %p279 = pneg %p127
        %p280 = pneg %p156
        %p281 = pneg %p153
        %s282 = sand.u32 %s143, 1
        %s283 = scalar_lea.sflag [#allocation7], %s282
        %s284 = sand.u32 %s143, 1
        %s285 = smul.addr %s284, 8
        %s286 = scalar_lea.vmem [#allocation6], %s285
        %p287 = pneg %p177
        %p288 = pneg %p174
        %p289 = pneg %p198
        %p290 = pneg %p195
        %p291 = pneg %p219
        %p292 = pneg %p216
        %p293 = scmp.lt.s32.totalorder %s25, 1
        %s294 = scalar_select %p293, %s25, 1
        %s295 = smul.addr %s294, 2
        %s296 = smul.addr %s295, 4
        %s297 = scalar_lea.vmem %s0, %s296
        %p298 = scmp.eq.s32.totalorder %s25, 0
        // Predicated region
        $region41: #{tpu_custom_call.1} parent=39 // pred_check
          %p299 = pneg %p298
        $region42: #{tpu_custom_call.1} parent=39 // pred_check_branch
          %301 = sbr.rel (%p299) target = $region44
        $region43: #{tpu_custom_call.1} parent=39 // pred_region
          %vm302 = vcmask 0
          %303 = vst.msk [vmem:[#allocation2] sm:$0x1] %vm302, 0.0
          %304 = vst.msk [vmem:[#allocation3] sm:$0x1] %vm302, 0.0
          %305 = vst.msk [vmem:[#allocation4] sm:$0x1] %vm302, 0.0
          %306 = vst.msk [vmem:[#allocation5] sm:$0x1] %vm302, 0.0
        $region44: #{tpu_custom_call.1} parent=39 // pred_fallthru
          _
        %v307 = vld [vmem:[%s297] sm:$0xff]
        %v308 = vld [vmem:[%s1] sm:$0xff]
        %v309 = vld [vmem:[%s1 + $0x8] sm:$0xff]
        %v310 = vld [vmem:[%s1 + $0x10] sm:$0xff]
        %v311 = vld [vmem:[%s1 + $0x18] sm:$0xff]
        %v312 = vld [vmem:[%s3] sm:$0xf]
        %v313 = vld [vmem:[%s2] sm:$0xff]
        %v314 = vld [vmem:[%s2 + $0x8] sm:$0xff]
        %v315 = vld [vmem:[%s2 + $0x10] sm:$0xff]
        %v316 = vld [vmem:[%s2 + $0x18] sm:$0xff]
        %v317 = vld [vmem:[%s4] sm:$0xf]
        %319 = vset.pattern.permute.xlu0 0
        %320 = vperm.xlu0 %319, %v313
        %v321 = vpop.permute.xlu0 %320
        %324 = vset.pattern.permute.xlu0 0
        %325 = vperm.xlu0 %324, %v314
        %v326 = vpop.permute.xlu0 %325
        %329 = vset.pattern.permute.xlu0 0
        %330 = vperm.xlu0 %329, %v315
        %v331 = vpop.permute.xlu0 %330
        %334 = vset.pattern.permute.xlu0 0
        %335 = vperm.xlu0 %334, %v316
        %v336 = vpop.permute.xlu0 %335
        %v339 = vcombine.high %v307, %v307
        %vm340 = vcmask 31744
        %v342 = vsel %vm340, %v308, 0
        %v345 = vsel %vm340, %v309, 0
        %v348 = vsel %vm340, %v310, 0
        %v351 = vsel %vm340, %v311, 0
        %vm353 = vcmask 1043456
        %v354 = vsel %vm353, %v307, 0
        %v356 = vsel %vm353, %v339, 0
        %358 = vmatprep.subr.mxu0 %v356
        %359 = vmatpush1.msra.mxu0 %v354
        %360 = vmatprep.subr.mxu0 0.0
        %361 = vmatpush1.msra.mxu0 0.0
        %362 = vmatprep.subr.mxu0 0.0
        %363 = vmatpush1.msra.mxu0 0.0
        %364 = vmatprep.subr.mxu0 0.0
        %365 = vmatpush1.msra.mxu0 0.0
        %366 = vmatprep.subr.mxu0 0.0
        %367 = vmatpush1.msra.mxu0 0.0
        %368 = vmatprep.subr.mxu0 0.0
        %369 = vmatpush1.msra.mxu0 0.0
        %370 = vmatprep.subr.mxu0 0.0
        %371 = vmatpush1.msra.mxu0 0.0
        %372 = vmatprep.subr.mxu0 0.0
        %373 = vmatpush1.msra.mxu0 0.0
        %374 = vmatprep.subr.mxu0 0.0
        %375 = vmatpush1.msra.mxu0 0.0
        %376 = vmatprep.subr.mxu0 0.0
        %377 = vmatpush1.msra.mxu0 0.0
        %378 = vmatprep.subr.mxu0 0.0
        %379 = vmatpush1.msra.mxu0 0.0
        %380 = vmatprep.subr.mxu0 0.0
        %381 = vmatpush1.msra.mxu0 0.0
        %382 = vmatprep.subr.mxu0 0.0
        %383 = vmatpush1.msra.mxu0 0.0
        %384 = vmatprep.subr.mxu0 0.0
        %385 = vmatpush1.msra.mxu0 0.0
        %386 = vmatprep.subr.mxu0 0.0
        %387 = vmatpush1.msra.mxu0 0.0
        %388 = vmatprep.subr.mxu0 0.0
        %389 = vmatpush1.msra.mxu0 0.0
        %390 = vmatprep.subr.mxu0 0.0
        %391 = vmatpush1.msra.mxu0 0.0
        %392 = vmatprep.subr.mxu0 0.0
        %393 = vmatpush1.msra.mxu0 0.0
        %394 = vmatprep.subr.mxu0 0.0
        %395 = vmatpush1.msra.mxu0 0.0
        %396 = vmatprep.subr.mxu0 0.0
        %397 = vmatpush1.msra.mxu0 0.0
        %398 = vmatprep.subr.mxu0 0.0
        %399 = vmatpush1.msra.mxu0 0.0
        %400 = vmatprep.subr.mxu0 0.0
        %401 = vmatpush1.msra.mxu0 0.0
        %402 = vmatprep.subr.mxu0 0.0
        %403 = vmatpush1.msra.mxu0 0.0
        %404 = vmatprep.subr.mxu0 0.0
        %405 = vmatpush1.msra.mxu0 0.0
        %406 = vmatprep.subr.mxu0 0.0
        %407 = vmatpush1.msra.mxu0 0.0
        %408 = vmatprep.subr.mxu0 0.0
        %409 = vmatpush1.msra.mxu0 0.0
        %410 = vmatprep.subr.mxu0 0.0
        %411 = vmatpush1.msra.mxu0 0.0
        %412 = vmatprep.subr.mxu0 0.0
        %413 = vmatpush1.msra.mxu0 0.0
        %414 = vmatprep.subr.mxu0 0.0
        %415 = vmatpush1.msra.mxu0 0.0
        %416 = vmatprep.subr.mxu0 0.0
        %417 = vmatpush1.msra.mxu0 0.0
        %418 = vmatprep.subr.mxu0 0.0
        %419 = vmatpush1.msra.mxu0 0.0
        %420 = vmatprep.subr.mxu0 0.0
        %421 = vmatpush1.msra.mxu0 0.0
        %422 = vmatprep.mubr.f32.mxu0 0.0
        %423 = vmatmul.mubr.f32.gmra.mrb[0].mxu0 %v342
        %v424 = vpop.f32.mrb[0].mxu0
        %v425 = vadd.f32 %v321, %v424
        %v426 = vpop.f32.mrb[0].mxu0
        %v427 = vadd.f32 %v321, %v426
        %428 = vmatprep.mubr.f32.mxu0 0.0
        %429 = vmatmul.mubr.f32.gmra.mrb[0].mxu0 %v345
        %v430 = vpop.f32.mrb[0].mxu0
        %v431 = vadd.f32 %v326, %v430
        %v432 = vpop.f32.mrb[0].mxu0
        %v433 = vadd.f32 %v326, %v432
        %434 = vmatprep.mubr.f32.mxu0 0.0
        %435 = vmatmul.mubr.f32.gmra.mrb[0].mxu0 %v348
        %v436 = vpop.f32.mrb[0].mxu0
        %v437 = vadd.f32 %v331, %v436
        %v438 = vpop.f32.mrb[0].mxu0
        %v439 = vadd.f32 %v331, %v438
        %440 = vmatprep.mubr.f32.mxu0 0.0
        %441 = vmatmul.mubr.f32.gmra.mrb[0].mxu0 %v351
        %v442 = vpop.f32.mrb[0].mxu0
        %v443 = vadd.f32 %v336, %v442
        %v444 = vpop.f32.mrb[0].mxu0
        %v445 = vadd.f32 %v336, %v444
        %446 = vdwg.mxu0
        %v447 = vmax.f32 %v425, 0.0
        %v448 = vmax.f32 %v427, 0.0
        %v449 = vmax.f32 %v431, 0.0
        %v450 = vmax.f32 %v433, 0.0
        %v451 = vmax.f32 %v437, 0.0
        %v452 = vmax.f32 %v439, 0.0
        %v453 = vmax.f32 %v443, 0.0
        %v454 = vmax.f32 %v445, 0.0
        %456 = vset.pattern.permute.xlu0 0
        %457 = vperm.xlu0 %456, %v317
        %v458 = vpop.permute.xlu0 %457
        %vm460 = vcmask 261120
        %v462 = vsel %vm460, %v312, 0
        %464 = vmatprep.subr.mxu0 %v448
        %465 = vmatpush1.msra.mxu0 %v447
        %466 = vmatprep.subr.mxu0 %v450
        %467 = vmatpush1.msra.mxu0 %v449
        %468 = vmatprep.subr.mxu0 %v452
        %469 = vmatpush1.msra.mxu0 %v451
        %470 = vmatprep.subr.mxu0 %v454
        %471 = vmatpush1.msra.mxu0 %v453
        %472 = vmatprep.subr.mxu0 0.0
        %473 = vmatpush1.msra.mxu0 0.0
        %474 = vmatprep.subr.mxu0 0.0
        %475 = vmatpush1.msra.mxu0 0.0
        %476 = vmatprep.subr.mxu0 0.0
        %477 = vmatpush1.msra.mxu0 0.0
        %478 = vmatprep.subr.mxu0 0.0
        %479 = vmatpush1.msra.mxu0 0.0
        %480 = vmatprep.subr.mxu0 0.0
        %481 = vmatpush1.msra.mxu0 0.0
        %482 = vmatprep.subr.mxu0 0.0
        %483 = vmatpush1.msra.mxu0 0.0
        %484 = vmatprep.subr.mxu0 0.0
        %485 = vmatpush1.msra.mxu0 0.0
        %486 = vmatprep.subr.mxu0 0.0
        %487 = vmatpush1.msra.mxu0 0.0
        %488 = vmatprep.subr.mxu0 0.0
        %489 = vmatpush1.msra.mxu0 0.0
        %490 = vmatprep.subr.mxu0 0.0
        %491 = vmatpush1.msra.mxu0 0.0
        %492 = vmatprep.subr.mxu0 0.0
        %493 = vmatpush1.msra.mxu0 0.0
        %494 = vmatprep.subr.mxu0 0.0
        %495 = vmatpush1.msra.mxu0 0.0
        %496 = vmatprep.subr.mxu0 0.0
        %497 = vmatpush1.msra.mxu0 0.0
        %498 = vmatprep.subr.mxu0 0.0
        %499 = vmatpush1.msra.mxu0 0.0
        %500 = vmatprep.subr.mxu0 0.0
        %501 = vmatpush1.msra.mxu0 0.0
        %502 = vmatprep.subr.mxu0 0.0
        %503 = vmatpush1.msra.mxu0 0.0
        %504 = vmatprep.subr.mxu0 0.0
        %505 = vmatpush1.msra.mxu0 0.0
        %506 = vmatprep.subr.mxu0 0.0
        %507 = vmatpush1.msra.mxu0 0.0
        %508 = vmatprep.subr.mxu0 0.0
        %509 = vmatpush1.msra.mxu0 0.0
        %510 = vmatprep.subr.mxu0 0.0
        %511 = vmatpush1.msra.mxu0 0.0
        %512 = vmatprep.subr.mxu0 0.0
        %513 = vmatpush1.msra.mxu0 0.0
        %514 = vmatprep.subr.mxu0 0.0
        %515 = vmatpush1.msra.mxu0 0.0
        %516 = vmatprep.subr.mxu0 0.0
        %517 = vmatpush1.msra.mxu0 0.0
        %518 = vmatprep.subr.mxu0 0.0
        %519 = vmatpush1.msra.mxu0 0.0
        %520 = vmatprep.subr.mxu0 0.0
        %521 = vmatpush1.msra.mxu0 0.0
        %522 = vmatprep.subr.mxu0 0.0
        %523 = vmatpush1.msra.mxu0 0.0
        %524 = vmatprep.subr.mxu0 0.0
        %525 = vmatpush1.msra.mxu0 0.0
        %526 = vmatprep.subr.mxu0 0.0
        %527 = vmatpush1.msra.mxu0 0.0
        %528 = vmatprep.mubr.f32.mxu0 0.0
        %529 = vmatmul.mubr.f32.gmra.mrb[0].mxu0 %v462
        %v530 = vpop.f32.mrb[0].mxu0
        %v531 = vadd.f32 %v458, %v530
        %v532 = vpop.f32.mrb[0].mxu0
        %v533 = vadd.f32 %v458, %v532
        %534 = vdwg.mxu0
        %v536 = vsel %vm353, %v531, 0
        %v539 = vsel %vm353, %v533, 0
        %541 = vmatprep.subr.mxu0 %v539
        %542 = vmatpush1.msra.mxu0 %v536
        %543 = vmatprep.subr.mxu0 0.0
        %544 = vmatpush1.msra.mxu0 0.0
        %545 = vmatprep.subr.mxu0 0.0
        %546 = vmatpush1.msra.mxu0 0.0
        %547 = vmatprep.subr.mxu0 0.0
        %548 = vmatpush1.msra.mxu0 0.0
        %549 = vmatprep.subr.mxu0 0.0
        %550 = vmatpush1.msra.mxu0 0.0
        %551 = vmatprep.subr.mxu0 0.0
        %552 = vmatpush1.msra.mxu0 0.0
        %553 = vmatprep.subr.mxu0 0.0
        %554 = vmatpush1.msra.mxu0 0.0
        %555 = vmatprep.subr.mxu0 0.0
        %556 = vmatpush1.msra.mxu0 0.0
        %557 = vmatprep.subr.mxu0 0.0
        %558 = vmatpush1.msra.mxu0 0.0
        %559 = vmatprep.subr.mxu0 0.0
        %560 = vmatpush1.msra.mxu0 0.0
        %561 = vmatprep.subr.mxu0 0.0
        %562 = vmatpush1.msra.mxu0 0.0
        %563 = vmatprep.subr.mxu0 0.0
        %564 = vmatpush1.msra.mxu0 0.0
        %565 = vmatprep.subr.mxu0 0.0
        %566 = vmatpush1.msra.mxu0 0.0
        %567 = vmatprep.subr.mxu0 0.0
        %568 = vmatpush1.msra.mxu0 0.0
        %569 = vmatprep.subr.mxu0 0.0
        %570 = vmatpush1.msra.mxu0 0.0
        %571 = vmatprep.subr.mxu0 0.0
        %572 = vmatpush1.msra.mxu0 0.0
        %573 = vmatprep.subr.mxu0 0.0
        %574 = vmatpush1.msra.mxu0 0.0
        %575 = vmatprep.subr.mxu0 0.0
        %576 = vmatpush1.msra.mxu0 0.0
        %577 = vmatprep.subr.mxu0 0.0
        %578 = vmatpush1.msra.mxu0 0.0
        %579 = vmatprep.subr.mxu0 0.0
        %580 = vmatpush1.msra.mxu0 0.0
        %581 = vmatprep.subr.mxu0 0.0
        %582 = vmatpush1.msra.mxu0 0.0
        %583 = vmatprep.subr.mxu0 0.0
        %584 = vmatpush1.msra.mxu0 0.0
        %585 = vmatprep.subr.mxu0 0.0
        %586 = vmatpush1.msra.mxu0 0.0
        %587 = vmatprep.subr.mxu0 0.0
        %588 = vmatpush1.msra.mxu0 0.0
        %589 = vmatprep.subr.mxu0 0.0
        %590 = vmatpush1.msra.mxu0 0.0
        %591 = vmatprep.subr.mxu0 0.0
        %592 = vmatpush1.msra.mxu0 0.0
        %593 = vmatprep.subr.mxu0 0.0
        %594 = vmatpush1.msra.mxu0 0.0
        %595 = vmatprep.subr.mxu0 0.0
        %596 = vmatpush1.msra.mxu0 0.0
        %597 = vmatprep.subr.mxu0 0.0
        %598 = vmatpush1.msra.mxu0 0.0
        %599 = vmatprep.subr.mxu0 0.0
        %600 = vmatpush1.msra.mxu0 0.0
        %601 = vmatprep.subr.mxu0 0.0
        %602 = vmatpush1.msra.mxu0 0.0
        %603 = vmatprep.subr.mxu0 0.0
        %604 = vmatpush1.msra.mxu0 0.0
        %605 = vmatprep.mubr.f32.mxu0 0.0
        %606 = vmatmul.mubr.f32.gmra.mrb[0].mxu0 %v342
        %v607 = vpop.f32.mrb[0].mxu0
        %v608 = vadd.f32 %v321, %v607
        %v609 = vpop.f32.mrb[0].mxu0
        %v610 = vadd.f32 %v321, %v609
        %611 = vmatprep.mubr.f32.mxu0 0.0
        %612 = vmatmul.mubr.f32.gmra.mrb[0].mxu0 %v345
        %v613 = vpop.f32.mrb[0].mxu0
        %v614 = vadd.f32 %v326, %v613
        %v615 = vpop.f32.mrb[0].mxu0
        %v616 = vadd.f32 %v326, %v615
        %617 = vmatprep.mubr.f32.mxu0 0.0
        %618 = vmatmul.mubr.f32.gmra.mrb[0].mxu0 %v348
        %v619 = vpop.f32.mrb[0].mxu0
        %v620 = vadd.f32 %v331, %v619
        %v621 = vpop.f32.mrb[0].mxu0
        %v622 = vadd.f32 %v331, %v621
        %623 = vmatprep.mubr.f32.mxu0 0.0
        %624 = vmatmul.mubr.f32.gmra.mrb[0].mxu0 %v351
        %v625 = vpop.f32.mrb[0].mxu0
        %v626 = vadd.f32 %v336, %v625
        %v627 = vpop.f32.mrb[0].mxu0
        %v628 = vadd.f32 %v336, %v627
        %629 = vdwg.mxu0
        %v630 = vmax.f32 %v608, 0.0
        %v631 = vmax.f32 %v610, 0.0
        %v632 = vmax.f32 %v614, 0.0
        %v633 = vmax.f32 %v616, 0.0
        %v634 = vmax.f32 %v620, 0.0
        %v635 = vmax.f32 %v622, 0.0
        %v636 = vmax.f32 %v626, 0.0
        %v637 = vmax.f32 %v628, 0.0
        %v638 = vcombine.low %v531, %v533
        %640 = vst [vmem:[%s286] sm:$0xff] %v638
        %v641 = vsub.f32 %v630, %v447
        %v642 = vsub.f32 %v631, %v448
        %v643 = vsub.f32 %v632, %v449
        %v644 = vsub.f32 %v633, %v450
        %v645 = vsub.f32 %v634, %v451
        %v646 = vsub.f32 %v635, %v452
        %v647 = vsub.f32 %v636, %v453
        %v648 = vsub.f32 %v637, %v454
        %v650 = vsub.f32 %v531, %v307
        %v651 = vsub.f32 %v533, %v339
        %v652 = vrot.slane %v531, 7
        %v653 = vrot.slane %v533, 7
        %v656 = vsub.f32 %v531, %v652
        %v657 = vsub.f32 %v533, %v653
        %v658 = vlaneseq
        %v659 = vand.u32 %v658, 127
        %v660 = vadd.s32 %v659, 128
        %vm661 = vcmp.ge.s32.totalorder %v659, 16
        %vm662 = vcmp.ge.s32.totalorder %v660, 16
        %663 = vrot.lane.b32.xlu0 %v531, 16
        %v664 = vpop.permute.xlu0 %663
        %665 = vrot.lane.b32.xlu0 %v533, 16
        %v666 = vpop.permute.xlu0 %665
        %vm667 = vcmp.lt.s32.totalorder %v659, 16
        %v668 = vsel %vm667, %v664, %v666
        %v669 = vsel %vm667, %v666, %v664
        %v670 = vsub.f32 %v531, %v669
        %v671 = vsub.f32 %v533, %v668
        %v672 = vsel %vm661, %v670, 0.0
        %v673 = vsel %vm662, %v671, 0.0
        %v674 = vld [vmem:[#allocation2] sm:$0x1]
        %v675 = vmul.f32 %v641, %v641
        %v676 = vmul.f32 %v642, %v642
        %v677 = vmul.f32 %v643, %v643
        %v678 = vmul.f32 %v644, %v644
        %v679 = vmul.f32 %v645, %v645
        %v680 = vmul.f32 %v646, %v646
        %v681 = vmul.f32 %v647, %v647
        %v682 = vmul.f32 %v648, %v648
        %v683 = vadd.f32 %v675, %v676
        %v684 = vadd.f32 %v683, %v677
        %v685 = vadd.f32 %v684, %v678
        %v686 = vadd.f32 %v685, %v679
        %v687 = vadd.f32 %v686, %v680
        %v688 = vadd.f32 %v687, %v681
        %v689 = vadd.f32 %v688, %v682
        %690 = vadd.xlane.f32.xlu0 %v689
        %v691 = vpop.xlane.xlu0 %690
        %v692 = vrot.slane %v691, 4
        %v693 = vadd.f32 %v691, %v692
        %v694 = vrot.slane %v693, 2
        %v695 = vadd.f32 %v693, %v694
        %v696 = vrot.slane %v695, 1
        %v697 = vadd.f32 %v695, %v696
        %s698 = vtos %v697
        %v699 = vstv %s698
        %v700 = vadd.f32 %v674, %v699
        %vm701 = vcmask 0
        %702 = vst.msk [vmem:[#allocation2] sm:$0x1] %vm701, %v700
        %v703 = vld [vmem:[#allocation3] sm:$0x1]
        %v704 = vmul.f32 %v650, %v650
        %v705 = vmul.f32 %v651, %v651
        %v706 = vsel %vm353, %v704, 0.0
        %v707 = vsel %vm353, %v705, 0.0
        %v708 = vadd.f32 %v706, %v707
        %709 = vadd.xlane.f32.xlu0 %v708
        %v710 = vpop.xlane.xlu0 %709
        %v711 = vrot.slane %v710, 4
        %v712 = vadd.f32 %v710, %v711
        %v713 = vrot.slane %v712, 2
        %v714 = vadd.f32 %v712, %v713
        %v715 = vrot.slane %v714, 1
        %v716 = vadd.f32 %v714, %v715
        %s717 = vtos %v716
        %v718 = vstv %s717
        %v719 = vadd.f32 %v703, %v718
        %720 = vst.msk [vmem:[#allocation3] sm:$0x1] %vm701, %v719
        %v721 = vld [vmem:[#allocation4] sm:$0x1]
        %v722 = vmul.f32 %v656, %v656
        %v723 = vmul.f32 %v657, %v657
        %v726 = vrot.slane %v722, 1
        %v727 = vrot.slane %v723, 1
        %vm730 = vcmask 1042432
        %v731 = vsel %vm730, %v726, 0.0
        %v732 = vsel %vm730, %v727, 0.0
        %v733 = vadd.f32 %v731, %v732
        %734 = vadd.xlane.f32.xlu0 %v733
        %v735 = vpop.xlane.xlu0 %734
        %v736 = vrot.slane %v735, 4
        %v737 = vadd.f32 %v735, %v736
        %v738 = vrot.slane %v737, 2
        %v739 = vadd.f32 %v737, %v738
        %v740 = vrot.slane %v739, 1
        %v741 = vadd.f32 %v739, %v740
        %s742 = vtos %v741
        %v743 = vstv %s742
        %v744 = vadd.f32 %v721, %v743
        %745 = vst.msk [vmem:[#allocation4] sm:$0x1] %vm701, %v744
        %v746 = vld [vmem:[#allocation5] sm:$0x1]
        %v747 = vmul.f32 %v672, %v672
        %v748 = vmul.f32 %v673, %v673
        %v749 = vsel %vm353, %v747, 0.0
        %v750 = vsel %vm353, %v748, 0.0
        %v751 = vadd.f32 %v749, %v750
        %752 = vadd.xlane.f32.xlu0 %v751
        %v753 = vpop.xlane.xlu0 %752
        %v754 = vrot.slane %v753, 4
        %v755 = vadd.f32 %v753, %v754
        %v756 = vrot.slane %v755, 2
        %v757 = vadd.f32 %v755, %v756
        %v758 = vrot.slane %v757, 1
        %v759 = vadd.f32 %v757, %v758
        %s760 = vtos %v759
        %v761 = vstv %s760
        %v762 = vadd.f32 %v746, %v761
        %763 = vst.msk [vmem:[#allocation5] sm:$0x1] %vm701, %v762
        %p764 = scmp.eq.s32.totalorder %s25, 1
        // Predicated region
        $region45: #{tpu_custom_call.1} parent=39 // pred_check
          %p765 = pneg %p764
        $region46: #{tpu_custom_call.1} parent=39 // pred_check_branch
          %767 = sbr.rel (%p765) target = $region48
        $region47: #{tpu_custom_call.1} parent=39 // pred_region
          %v768 = vld [vmem:[#allocation2] sm:$0x1]
          %v769 = vmul.f32 %v768, 6.1035156e-05
          %v770 = vrsqrt.pop %v769
          %v771 = vmul.f32 %v769, %v770
          %vm772 = vcmp.eq.f32.partialorder %v769, inf
          %v773 = vsel %vm772, %v769, %v771
          %vm774 = vcmp.eq.f32.partialorder %v769, 0.0
          %v775 = vand.u32 %v769, 2147483648
          %v776 = vsel %vm774, %v775, %v773
          %v777 = vld [vmem:[#allocation3] sm:$0x1]
          %v778 = vmul.f32 %v777, 0.00048828125
          %v779 = vrsqrt.pop %v778
          %v780 = vmul.f32 %v778, %v779
          %vm781 = vcmp.eq.f32.partialorder %v778, inf
          %v782 = vsel %vm781, %v778, %v780
          %vm783 = vcmp.eq.f32.partialorder %v778, 0.0
          %v784 = vand.u32 %v778, 2147483648
          %v785 = vsel %vm783, %v784, %v782
          %v786 = vld [vmem:[#allocation4] sm:$0x1]
          %v787 = vld [vmem:[#allocation5] sm:$0x1]
          %v788 = vadd.f32 %v786, %v787
          %789 = vst.msk [vmem:[#allocation10] sm:$0x1] %vm701, %v776
          %790 = vst.msk [vmem:[#allocation11] sm:$0x1] %vm701, %v785
          %v791 = vmul.f32 %v788, 0.0001
          %v792 = vadd.f32 %v791, %v776
          %v793 = vadd.f32 %v792, %v785
          %794 = vst.msk [vmem:[#allocation8] sm:$0x1] %vm701, %v793
        $region48: #{tpu_custom_call.1} parent=39 // pred_fallthru
          _
        %s795 = sand.u32 %s143, 1
        %s796 = scalar_lea.sflag [#allocation7], %s795
        %s797 = sand.u32 %s143, 1
        %s798 = smul.addr %s797, 8
        %s799 = scalar_lea.vmem [#allocation6], %s798
        // Predicated region
        $region49: #{tpu_custom_call.1} parent=39 // pred_check
          %p800 = pneg %p153
        $region50: #{tpu_custom_call.1} parent=39 // pred_check_branch
          %802 = sbr.rel (%p800) target = $region52
        $region51: #{tpu_custom_call.1} parent=39 // pred_region
          %s804 = ssub.s32 128, 128
          %805 = vsyncadd %s796, %s804
          %s806 = smul.addr %s25, 2
          %s807 = smul.addr %s806, 64
          %s808 = scalar_lea.hbm %s5, %s807
          %s810 = sshll.u32 %s799, 4
          %s811 = int_to_ptr.vmem [resolvable:$true] %s810
          %813 = dma.vmem_to_hbm [thread:$0]  %s811, 128, %s808, %s796
        $region52: #{tpu_custom_call.1} parent=39 // pred_fallthru
          _
        // Predicated region
        $region53: #{tpu_custom_call.1} parent=39 // pred_check
          %p814 = pneg %p174
        $region54: #{tpu_custom_call.1} parent=39 // pred_check_branch
          %816 = sbr.rel (%p814) target = $region56
        $region55: #{tpu_custom_call.1} parent=39 // pred_region
          %s818 = ssub.s32 16, 16
          %819 = vsyncadd [#allocation9], %s818
          %s821 = sshll.u32 [#allocation8], 4
          %s822 = int_to_ptr.vmem [resolvable:$true] %s821
          %824 = dma.vmem_to_hbm [thread:$0]  %s822, 16, %s6, [#allocation9]
        $region56: #{tpu_custom_call.1} parent=39 // pred_fallthru
          _
        // Predicated region
        $region57: #{tpu_custom_call.1} parent=39 // pred_check
          %p825 = pneg %p195
        $region58: #{tpu_custom_call.1} parent=39 // pred_check_branch
          %827 = sbr.rel (%p825) target = $region60
        $region59: #{tpu_custom_call.1} parent=39 // pred_region
          %s829 = ssub.s32 16, 16
          %830 = vsyncadd [#allocation9], %s829
          %s832 = sshll.u32 [#allocation10], 4
          %s833 = int_to_ptr.vmem [resolvable:$true] %s832
          %835 = dma.vmem_to_hbm [thread:$0]  %s833, 16, %s7, [#allocation9]
        $region60: #{tpu_custom_call.1} parent=39 // pred_fallthru
          _
        // Predicated region
        $region61: #{tpu_custom_call.1} parent=39 // pred_check
          %p836 = pneg %p216
        $region62: #{tpu_custom_call.1} parent=39 // pred_check_branch
          %838 = sbr.rel (%p836) target = $region64
        $region63: #{tpu_custom_call.1} parent=39 // pred_region
          %s840 = ssub.s32 16, 16
          %841 = vsyncadd [#allocation12], %s840
          %s843 = sshll.u32 [#allocation11], 4
          %s844 = int_to_ptr.vmem [resolvable:$true] %s843
          %846 = dma.vmem_to_hbm [thread:$0]  %s844, 16, %s8, [#allocation12]
        $region64: #{tpu_custom_call.1} parent=39 // pred_fallthru
          _
        // Predicated region
        $region65: #{tpu_custom_call.1} parent=39 // pred_check
          %p847 = pneg %p174
        $region66: #{tpu_custom_call.1} parent=39 // pred_check_branch
          %849 = sbr.rel (%p847) target = $region68
        $region67: #{tpu_custom_call.1} parent=39 // pred_region
          %850 = dma.done [#allocation9], 16
        $region68: #{tpu_custom_call.1} parent=39 // pred_fallthru
          _
        // Predicated region
        $region69: #{tpu_custom_call.1} parent=39 // pred_check
          %p851 = pneg %p195
        $region70: #{tpu_custom_call.1} parent=39 // pred_check_branch
          %853 = sbr.rel (%p851) target = $region72
        $region71: #{tpu_custom_call.1} parent=39 // pred_region
          %854 = dma.done [#allocation9], 16
        $region72: #{tpu_custom_call.1} parent=39 // pred_fallthru
          _
        // Predicated region
        $region73: #{tpu_custom_call.1} parent=39 // pred_check
          %p855 = pneg %p216
        $region74: #{tpu_custom_call.1} parent=39 // pred_check_branch
          %857 = sbr.rel (%p855) target = $region76
        $region75: #{tpu_custom_call.1} parent=39 // pred_region
          %858 = dma.done [#allocation12], 16
        $region76: #{tpu_custom_call.1} parent=39 // pred_fallthru
          _
      $region40: #{tpu_custom_call.1} parent=5 // pred_fallthru
        _
      %p859 = scmp.le.s32.totalorder 2, %s20
      // Predicated region
      $region77: #{tpu_custom_call.1} parent=5 // pred_check
        %p860 = pneg %p859
      $region78: #{tpu_custom_call.1} parent=5 // pred_check_branch
        %862 = sbr.rel (%p860) target = $region80
      $region79: #{tpu_custom_call.1} parent=5 // pred_region
        %s863 = ssub.s32 %s20, 2
        // Predicated region
        $region81: #{tpu_custom_call.1} parent=79 // pred_check
          %p864 = pneg %p159
        $region82: #{tpu_custom_call.1} parent=79 // pred_check_branch
          %866 = sbr.rel (%p864) target = $region84
        $region83: #{tpu_custom_call.1} parent=79 // pred_region
          %s867 = sand.u32 %s144, 1
          %s868 = scalar_lea.sflag [#allocation7], %s867
          %s869 = sand.u32 %s144, 1
          %s870 = smul.addr %s869, 8
          %s871 = scalar_lea.vmem [#allocation6], %s870
          %872 = dma.done %s868, 128
        $region84: #{tpu_custom_call.1} parent=79 // pred_fallthru
          _
      $region80: #{tpu_custom_call.1} parent=5 // pred_fallthru
        _
    $region6: #{tpu_custom_call.1} parent=1 // loop_footer
      %s24 = sadd.s32 1, %s20
    $region7: #{tpu_custom_call.1} parent=1 // loop_footer_branch
      %19 = sbr.rel target = $region3
    $region8: #{tpu_custom_call.1} parent=1 // loop_exit
      _
    %873 = vsyncpa [#allocation7], 1
    %s874 = scalar_lea.sflag [#allocation7], 1
    %875 = vsyncpa %s874, 1
    %876 = vsyncpa [#allocation9], 1
    %877 = vsyncpa [#allocation12], 1

</llo_original>
